<compile_context>
chip_gen: v5e
topology: v5e:2x2
jax: 0.10.0
libtpu: 0.0.40
codegen_flags: <defaults>
</compile_context>

<pallas_src>
import jax
import jax.numpy as jnp
import numpy as np
from jax.experimental import pallas as pl
from jax.experimental.pallas import tpu as pltpu


# -----------------------------------------------------------------------------
# Parameter init (plain numpy glue) — mirrors nearest_neighbors_pre_elu
# -----------------------------------------------------------------------------
def nearest_neighbors_pre_elu(features: np.ndarray, k: int, knn_metric: str, i: float) -> np.ndarray:
    """Dense kNN connectivity adjacency (cosine metric), then adj*i - i."""
    assert knn_metric == "cosine", "only cosine metric implemented"
    x = np.asarray(features, dtype=np.float32)
    norms = np.linalg.norm(x, axis=1, keepdims=True)
    norms = np.where(norms == 0.0, 1.0, norms)
    xn = x / norms
    sim = xn @ xn.T                                  # cosine similarity
    n = sim.shape[0]
    np.fill_diagonal(sim, -np.inf)                   # kneighbors_graph excludes self
    adj = np.zeros((n, n), dtype=np.float32)
    # top-k most similar (== smallest cosine distance) per row -> connectivity 1
    idx = np.argsort(-sim, axis=1)[:, :k]
    rows = np.repeat(np.arange(n), k)
    adj[rows, idx.reshape(-1)] = 1.0
    adj += np.eye(n, dtype=np.float32)               # add self-loops
    adj = adj * i - i                                # pre-elu scaling
    return adj.astype(np.float32)


# -----------------------------------------------------------------------------
# Pallas kernel: out = elu(Adj) + 1  (elementwise)
# -----------------------------------------------------------------------------
def _elu_plus_one_kernel(adj_ref, out_ref):
    x = adj_ref[...]
    # F.elu(alpha=1) + 1:  x + 1 for x > 0,  exp(x) for x <= 0 (expm1(x)+1).
    out_ref[...] = jnp.where(x > 0, x + 1.0, jnp.exp(x)).astype(out_ref.dtype)


# -----------------------------------------------------------------------------
# Tiling helpers
# -----------------------------------------------------------------------------
def _sublane_multiple(dtype) -> int:
    """Minimum sublane tile for this dtype (f32 -> 8, bf16 -> 16, int8/fp8 -> 32)."""
    itemsize = jnp.dtype(dtype).itemsize
    return max(8, 32 // max(1, itemsize))


def _tpu_generation_params() -> tuple[int, int, int]:
    """Return (tile_bytes, vmem_limit_bytes, num_tensorcores), generation-aware.

    Falls back to values that are safe on every generation (tile budget 8 MiB,
    48 MiB scoped VMEM limit — well under v7x's 64 MiB physical VMEM and far
    under v5e/v6e's 128 MiB) if the hardware query is unavailable.
    """
    tile_bytes = 8 * 1024 * 1024
    vmem_limit = 48 << 20
    num_cores = 1
    try:
        info = pltpu.get_tpu_info()
        vmem_cap = int(getattr(info, "vmem_capacity_bytes", 128 << 20))
        if vmem_cap <= (64 << 20):
            # v7x-class: 64 MiB VMEM per TensorCore, 2 TensorCores per chip.
            tile_bytes = 8 * 1024 * 1024     # in+out double-buffered ~= 32 MiB
            vmem_limit = 44 << 20            # headroom under 64 MiB physical
            num_cores = 2
        else:
            # v5e / v6e: 128 MiB physical VMEM, single TensorCore.
            tile_bytes = 8 * 1024 * 1024
            vmem_limit = 64 << 20
            num_cores = 1
    except Exception:
        pass
    return tile_bytes, vmem_limit, num_cores


def _round_up(v: int, m: int) -> int:
    return ((v + m - 1) // m) * m


# -----------------------------------------------------------------------------
# Forward: out = elu(Adj) + 1 via pallas_call
# -----------------------------------------------------------------------------
def fgp_forward(adj: jax.Array, *, block_rows: int | None = None) -> jax.Array:
    """Apply elu(Adj)+1 on the dense (N, N) adjacency using a Pallas kernel."""
    n_rows, n_cols = adj.shape
    dtype = adj.dtype
    itemsize = jnp.dtype(dtype).itemsize
    sub = _sublane_multiple(dtype)

    tile_bytes, vmem_limit, num_cores = _tpu_generation_params()

    row_bytes = n_cols * itemsize
    full_width_ok = sub * row_bytes <= tile_bytes

    if full_width_ok:
        # ---- Preferred path: full-width row slabs, contiguous DMA, 1-D grid ----
        max_rows = max(sub, ((tile_bytes // max(1, row_bytes)) // sub) * sub)
        br = min(n_rows, max_rows)
        if br < n_rows:
            br = max(sub, (br // sub) * sub)
        elif num_cores > 1 and n_rows >= 2 * sub:
            # Whole array fits one tile: split rows only when there are >= 2
            # TensorCores (v7x) so both get a block; keep a single step on
            # single-core v5e/v6e.
            half = _round_up((n_rows + 1) // 2, sub)
            if half < n_rows:
                br = half
        if block_rows is not None:
            br = n_rows if block_rows >= n_rows else max(sub, (block_rows // sub) * sub)

        grid = (pl.cdiv(n_rows, br),)
        in_specs = [pl.BlockSpec((br, n_cols), lambda r: (r, 0))]
        out_specs = pl.BlockSpec((br, n_cols), lambda r: (r, 0))
        dim_sem = ("parallel",)
    else:
        # ---- Fallback for extremely wide arrays: 2-D lane-dense tiling ----
        bc = max(128, ((tile_bytes // (sub * itemsize)) // 128) * 128)
        bc = min(bc, n_cols)
        br = sub
        grid = (pl.cdiv(n_rows, br), pl.cdiv(n_cols, bc))
        in_specs = [pl.BlockSpec((br, bc), lambda r, c: (r, c))]
        out_specs = pl.BlockSpec((br, bc), lambda r, c: (r, c))
        dim_sem = ("parallel", "parallel")

    return pl.pallas_call(
        _elu_plus_one_kernel,
        out_shape=jax.ShapeDtypeStruct((n_rows, n_cols), dtype),
        grid_spec=pltpu.PrefetchScalarGridSpec(
            num_scalar_prefetch=0,
            grid=grid,
            in_specs=in_specs,
            out_specs=out_specs,
        ),
        compiler_params=pltpu.CompilerParams(
            dimension_semantics=dim_sem,
            vmem_limit_bytes=vmem_limit),
    )(adj)


# -----------------------------------------------------------------------------
# FGP_learner equivalent
# -----------------------------------------------------------------------------
class FGPLearner:
    def __init__(self, features: np.ndarray, k: int, knn_metric: str, i: float, sparse: bool):
        self.k = k
        self.knn_metric = knn_metric
        self.i = i
        self.sparse = sparse
        # TODO(synk): sparse (torch.sparse coalesce) path not implemented; dense only.
        self.Adj = jnp.asarray(nearest_neighbors_pre_elu(features, k, knn_metric, i))

    def __call__(self, h):
        # `h` is unused in the reference forward (dense path).  Recompute every
        # call (matches the PyTorch module; no stale cache after Adj updates).
        # TODO(synk): for best perf, fuse elu(Adj)+1 into the downstream
        # consumer (e.g. GCN aggregation matmul) instead of materializing NxN.
        return fgp_forward(self.Adj)


if __name__ == "__main__":
    key = jax.random.PRNGKey(0)
    # Small shapes: 256 nodes, 16-dim node features (the `features` arg of __init__).
    num_nodes, feat_dim, k, i_scale = 256, 16, 8, 6
    features = np.asarray(jax.random.normal(key, (num_nodes, feat_dim), dtype=jnp.float32))

    learner = FGPLearner(features, k=k, knn_metric="cosine", i=i_scale, sparse=False)

    # `h` is an arbitrary node-feature input; the forward ignores it.
    h = jax.random.normal(jax.random.PRNGKey(1), (num_nodes, feat_dim), dtype=jnp.float32)

    out = learner(h)
    out = jax.block_until_ready(out)

    # Reference check in plain JAX (faithful F.elu(Adj) + 1).
    adj = learner.Adj
    ref = jnp.where(adj > 0, adj, jnp.expm1(adj)) + 1.0
    assert out.shape == (num_nodes, num_nodes)
    assert out.dtype == jnp.float32
    np.testing.assert_allclose(np.asarray(out), np.asarray(ref), rtol=1e-6, atol=1e-6)

    # Second call recomputes (matches PyTorch forward semantics) and stays correct.
    out2 = jax.block_until_ready(learner(h))
    np.testing.assert_allclose(np.asarray(out2), np.asarray(ref), rtol=1e-6, atol=1e-6)

    print("KERNEL_OK")
</pallas_src>

<mosaic_0001>
module attributes {stable_mosaic.version = 11 : i64} {
  func.func @_elu_plus_one_kernel(%arg0: i32, %arg1: memref<256x256xf32, #tpu.memory_space<vmem>>, %arg2: memref<256x256xf32, #tpu.memory_space<vmem>>) attributes {dimension_semantics = [#tpu.dimension_semantics<parallel>], iteration_bounds = array<i64: 1>, scalar_prefetch = 0 : i64, scratch_operands = 0 : i64, tpu.core_type = #tpu.core_type<tc>, window_params = [{transform_indices = @transform_0, window_bounds = array<i64: 256, 256>}, {transform_indices = @transform_1, window_bounds = array<i64: 256, 256>}]} {
    %c0 = arith.constant 0 : index
    %c0_0 = arith.constant 0 : index
    %0 = vector.load %arg1[%c0, %c0_0] : memref<256x256xf32, #tpu.memory_space<vmem>>, vector<256x256xf32>
    %cst = arith.constant 0.000000e+00 : f32
    %1 = vector.broadcast %cst : f32 to vector<256x256xf32>
    %2 = arith.cmpf ogt, %0, %1 : vector<256x256xf32>
    %cst_1 = arith.constant 1.000000e+00 : f32
    %3 = vector.broadcast %cst_1 : f32 to vector<256x256xf32>
    %4 = arith.addf %0, %3 : vector<256x256xf32>
    %5 = math.exp %0 : vector<256x256xf32>
    %6 = arith.select %2, %4, %5 : vector<256x256xi1>, vector<256x256xf32>
    %c0_2 = arith.constant 0 : index
    %c0_3 = arith.constant 0 : index
    %7 = vector.load %arg2[%c0_2, %c0_3] : memref<256x256xf32, #tpu.memory_space<vmem>>, vector<256x256xf32>
    tpu.vector_store %arg2[%c0_2, %c0_3], %6 {strides = array<i32>} : memref<256x256xf32, #tpu.memory_space<vmem>>, vector<256x256xf32>,
    return
  }
  func.func @transform_0(%arg0: i32) -> (i32, i32) {
    %c0_i32 = arith.constant 0 : i32
    %c0_i32_0 = arith.constant 0 : i32
    return %arg0, %c0_i32 : i32, i32
  }
  func.func @transform_1(%arg0: i32) -> (i32, i32) {
    %c0_i32 = arith.constant 0 : i32
    %c0_i32_0 = arith.constant 0 : i32
    return %arg0, %c0_i32 : i32, i32
  }
}

</mosaic_0001>

<llo_original>
// kernel: tpu_custom_call.1
$region0: #{tpu_custom_call.1}
  #allocation0 [shape = 'u32[]', space=smem, size = 0x4, offset = 0x4, fixed_abs, tag = 'smem constant byte address 0x4 - core index']
  #allocation1 [shape = 'u32[72,128]{1,0:T(1,128)}', space=vmem, size = 0x9000, scoped, tag = 'internal scratch']
  %s0 = inlined_call_operand.hbm [shape: f32[256,256], index: 0, kind: input, shape index: {}]
  %s1 = inlined_call_operand.hbm [shape: f32[256,256], index: 1, kind: output, shape index: {}]
  %s2 = sld [smem:[#allocation0]]
  $region18: #{tpu_custom_call.1} parent=0
    _
  %s4 = ssub.s32 1, %s2
  %s5 = scalar_select 0, %s4, %s2
  $region1: #{tpu_custom_call.1} parent=0
    #allocation2 [shape = 'u8[262144]{0}', space=vmem, size = 0x40000, scoped, tag = 'input window, operand 0, single buffered']
    #allocation3 [shape = 's32[1]{0}', space=sflag, size = 0x4, scoped, tag = 'scoped memory for tpu_custom_call.1']
    #allocation4 [shape = 's32[1]{0}', space=sflag, size = 0x4, scoped, tag = 'scoped memory for tpu_custom_call.1']
    #allocation5 [shape = 'u8[262144]{0}', space=vmem, size = 0x40000, scoped, tag = 'output window, operand 0, single buffered']
    %6 = vsyncpa [#allocation3], 0
    %7 = vsyncpa [#allocation4], 0
    // Predicated region
    $region2: #{tpu_custom_call.1} parent=1 // pred_check
      _
    $region3: #{tpu_custom_call.1} parent=1 // pred_check_branch
      %9 = sbr.rel (0) target = $region5
    $region4: #{tpu_custom_call.1} parent=1 // pred_region
      %11 = vsyncadd [#allocation3], 0
      %s12 = sshll.u32 %s0, 4
      %s13 = int_to_ptr.hbm [resolvable:$true] %s12
      %s14 = sshll.u32 [#allocation2], 4
      %s15 = int_to_ptr.vmem [resolvable:$true] %s14
      %20 = dma.hbm_to_vmem [thread:$0]  %s13, 8192, %s15, [#allocation3], 256, 256, 16
    $region5: #{tpu_custom_call.1} parent=1 // pred_fallthru
      _
    // Predicated region
    $region6: #{tpu_custom_call.1} parent=1 // pred_check
      _
    $region7: #{tpu_custom_call.1} parent=1 // pred_check_branch
      %22 = sbr.rel (0) target = $region9
    $region8: #{tpu_custom_call.1} parent=1 // pred_region
      %24 = dma.done [#allocation3], 8192
    $region9: #{tpu_custom_call.1} parent=1 // pred_fallthru
      _
    %v25 = vld [vmem:[#allocation2] sm:$0xff]
    %v26 = vld [vmem:[#allocation2 + $0x8] sm:$0xff]
    %v27 = vld [vmem:[#allocation2 + $0x10] sm:$0xff]
    %v28 = vld [vmem:[#allocation2 + $0x18] sm:$0xff]
    %v29 = vld [vmem:[#allocation2 + $0x20] sm:$0xff]
    %v30 = vld [vmem:[#allocation2 + $0x28] sm:$0xff]
    %v31 = vld [vmem:[#allocation2 + $0x30] sm:$0xff]
    %v32 = vld [vmem:[#allocation2 + $0x38] sm:$0xff]
    %v33 = vld [vmem:[#allocation2 + $0x40] sm:$0xff]
    %v34 = vld [vmem:[#allocation2 + $0x48] sm:$0xff]
    %v35 = vld [vmem:[#allocation2 + $0x50] sm:$0xff]
    %v36 = vld [vmem:[#allocation2 + $0x58] sm:$0xff]
    %v37 = vld [vmem:[#allocation2 + $0x60] sm:$0xff]
    %v38 = vld [vmem:[#allocation2 + $0x68] sm:$0xff]
    %v39 = vld [vmem:[#allocation2 + $0x70] sm:$0xff]
    %v40 = vld [vmem:[#allocation2 + $0x78] sm:$0xff]
    %v41 = vld [vmem:[#allocation2 + $0x80] sm:$0xff]
    %v42 = vld [vmem:[#allocation2 + $0x88] sm:$0xff]
    %v43 = vld [vmem:[#allocation2 + $0x90] sm:$0xff]
    %v44 = vld [vmem:[#allocation2 + $0x98] sm:$0xff]
    %v45 = vld [vmem:[#allocation2 + $0xa0] sm:$0xff]
    %v46 = vld [vmem:[#allocation2 + $0xa8] sm:$0xff]
    %v47 = vld [vmem:[#allocation2 + $0xb0] sm:$0xff]
    %v48 = vld [vmem:[#allocation2 + $0xb8] sm:$0xff]
    %v49 = vld [vmem:[#allocation2 + $0xc0] sm:$0xff]
    %v50 = vld [vmem:[#allocation2 + $0xc8] sm:$0xff]
    %v51 = vld [vmem:[#allocation2 + $0xd0] sm:$0xff]
    %v52 = vld [vmem:[#allocation2 + $0xd8] sm:$0xff]
    %v53 = vld [vmem:[#allocation2 + $0xe0] sm:$0xff]
    %v54 = vld [vmem:[#allocation2 + $0xe8] sm:$0xff]
    %v55 = vld [vmem:[#allocation2 + $0xf0] sm:$0xff]
    %v56 = vld [vmem:[#allocation2 + $0xf8] sm:$0xff]
    %v57 = vld [vmem:[#allocation2 + $0x100] sm:$0xff]
    %v58 = vld [vmem:[#allocation2 + $0x108] sm:$0xff]
    %v59 = vld [vmem:[#allocation2 + $0x110] sm:$0xff]
    %v60 = vld [vmem:[#allocation2 + $0x118] sm:$0xff]
    %v61 = vld [vmem:[#allocation2 + $0x120] sm:$0xff]
    %v62 = vld [vmem:[#allocation2 + $0x128] sm:$0xff]
    %v63 = vld [vmem:[#allocation2 + $0x130] sm:$0xff]
    %v64 = vld [vmem:[#allocation2 + $0x138] sm:$0xff]
    %v65 = vld [vmem:[#allocation2 + $0x140] sm:$0xff]
    %v66 = vld [vmem:[#allocation2 + $0x148] sm:$0xff]
    %v67 = vld [vmem:[#allocation2 + $0x150] sm:$0xff]
    %v68 = vld [vmem:[#allocation2 + $0x158] sm:$0xff]
    %v69 = vld [vmem:[#allocation2 + $0x160] sm:$0xff]
    %v70 = vld [vmem:[#allocation2 + $0x168] sm:$0xff]
    %v71 = vld [vmem:[#allocation2 + $0x170] sm:$0xff]
    %v72 = vld [vmem:[#allocation2 + $0x178] sm:$0xff]
    %v73 = vld [vmem:[#allocation2 + $0x180] sm:$0xff]
    %v74 = vld [vmem:[#allocation2 + $0x188] sm:$0xff]
    %v75 = vld [vmem:[#allocation2 + $0x190] sm:$0xff]
    %v76 = vld [vmem:[#allocation2 + $0x198] sm:$0xff]
    %v77 = vld [vmem:[#allocation2 + $0x1a0] sm:$0xff]
    %v78 = vld [vmem:[#allocation2 + $0x1a8] sm:$0xff]
    %v79 = vld [vmem:[#allocation2 + $0x1b0] sm:$0xff]
    %v80 = vld [vmem:[#allocation2 + $0x1b8] sm:$0xff]
    %v81 = vld [vmem:[#allocation2 + $0x1c0] sm:$0xff]
    %v82 = vld [vmem:[#allocation2 + $0x1c8] sm:$0xff]
    %v83 = vld [vmem:[#allocation2 + $0x1d0] sm:$0xff]
    %v84 = vld [vmem:[#allocation2 + $0x1d8] sm:$0xff]
    %v85 = vld [vmem:[#allocation2 + $0x1e0] sm:$0xff]
    %v86 = vld [vmem:[#allocation2 + $0x1e8] sm:$0xff]
    %v87 = vld [vmem:[#allocation2 + $0x1f0] sm:$0xff]
    %v88 = vld [vmem:[#allocation2 + $0x1f8] sm:$0xff]
    %vm89 = vcmp.gt.f32.partialorder %v25, 0.0
    %vm90 = vcmp.gt.f32.partialorder %v26, 0.0
    %vm91 = vcmp.gt.f32.partialorder %v27, 0.0
    %vm92 = vcmp.gt.f32.partialorder %v28, 0.0
    %vm93 = vcmp.gt.f32.partialorder %v29, 0.0
    %vm94 = vcmp.gt.f32.partialorder %v30, 0.0
    %vm95 = vcmp.gt.f32.partialorder %v31, 0.0
    %vm96 = vcmp.gt.f32.partialorder %v32, 0.0
    %vm97 = vcmp.gt.f32.partialorder %v33, 0.0
    %vm98 = vcmp.gt.f32.partialorder %v34, 0.0
    %vm99 = vcmp.gt.f32.partialorder %v35, 0.0
    %vm100 = vcmp.gt.f32.partialorder %v36, 0.0
    %vm101 = vcmp.gt.f32.partialorder %v37, 0.0
    %vm102 = vcmp.gt.f32.partialorder %v38, 0.0
    %vm103 = vcmp.gt.f32.partialorder %v39, 0.0
    %vm104 = vcmp.gt.f32.partialorder %v40, 0.0
    %vm105 = vcmp.gt.f32.partialorder %v41, 0.0
    %vm106 = vcmp.gt.f32.partialorder %v42, 0.0
    %vm107 = vcmp.gt.f32.partialorder %v43, 0.0
    %vm108 = vcmp.gt.f32.partialorder %v44, 0.0
    %vm109 = vcmp.gt.f32.partialorder %v45, 0.0
    %vm110 = vcmp.gt.f32.partialorder %v46, 0.0
    %vm111 = vcmp.gt.f32.partialorder %v47, 0.0
    %vm112 = vcmp.gt.f32.partialorder %v48, 0.0
    %vm113 = vcmp.gt.f32.partialorder %v49, 0.0
    %vm114 = vcmp.gt.f32.partialorder %v50, 0.0
    %vm115 = vcmp.gt.f32.partialorder %v51, 0.0
    %vm116 = vcmp.gt.f32.partialorder %v52, 0.0
    %vm117 = vcmp.gt.f32.partialorder %v53, 0.0
    %vm118 = vcmp.gt.f32.partialorder %v54, 0.0
    %vm119 = vcmp.gt.f32.partialorder %v55, 0.0
    %vm120 = vcmp.gt.f32.partialorder %v56, 0.0
    %vm121 = vcmp.gt.f32.partialorder %v57, 0.0
    %vm122 = vcmp.gt.f32.partialorder %v58, 0.0
    %vm123 = vcmp.gt.f32.partialorder %v59, 0.0
    %vm124 = vcmp.gt.f32.partialorder %v60, 0.0
    %vm125 = vcmp.gt.f32.partialorder %v61, 0.0
    %vm126 = vcmp.gt.f32.partialorder %v62, 0.0
    %vm127 = vcmp.gt.f32.partialorder %v63, 0.0
    %vm128 = vcmp.gt.f32.partialorder %v64, 0.0
    %vm129 = vcmp.gt.f32.partialorder %v65, 0.0
    %vm130 = vcmp.gt.f32.partialorder %v66, 0.0
    %vm131 = vcmp.gt.f32.partialorder %v67, 0.0
    %vm132 = vcmp.gt.f32.partialorder %v68, 0.0
    %vm133 = vcmp.gt.f32.partialorder %v69, 0.0
    %vm134 = vcmp.gt.f32.partialorder %v70, 0.0
    %vm135 = vcmp.gt.f32.partialorder %v71, 0.0
    %vm136 = vcmp.gt.f32.partialorder %v72, 0.0
    %vm137 = vcmp.gt.f32.partialorder %v73, 0.0
    %vm138 = vcmp.gt.f32.partialorder %v74, 0.0
    %vm139 = vcmp.gt.f32.partialorder %v75, 0.0
    %vm140 = vcmp.gt.f32.partialorder %v76, 0.0
    %vm141 = vcmp.gt.f32.partialorder %v77, 0.0
    %vm142 = vcmp.gt.f32.partialorder %v78, 0.0
    %vm143 = vcmp.gt.f32.partialorder %v79, 0.0
    %vm144 = vcmp.gt.f32.partialorder %v80, 0.0
    %vm145 = vcmp.gt.f32.partialorder %v81, 0.0
    %vm146 = vcmp.gt.f32.partialorder %v82, 0.0
    %vm147 = vcmp.gt.f32.partialorder %v83, 0.0
    %vm148 = vcmp.gt.f32.partialorder %v84, 0.0
    %vm149 = vcmp.gt.f32.partialorder %v85, 0.0
    %vm150 = vcmp.gt.f32.partialorder %v86, 0.0
    %vm151 = vcmp.gt.f32.partialorder %v87, 0.0
    %vm152 = vcmp.gt.f32.partialorder %v88, 0.0
    %v153 = vadd.f32 %v25, 1.0
    %v154 = vadd.f32 %v26, 1.0
    %v155 = vadd.f32 %v27, 1.0
    %v156 = vadd.f32 %v28, 1.0
    %v157 = vadd.f32 %v29, 1.0
    %v158 = vadd.f32 %v30, 1.0
    %v159 = vadd.f32 %v31, 1.0
    %v160 = vadd.f32 %v32, 1.0
    %v161 = vadd.f32 %v33, 1.0
    %v162 = vadd.f32 %v34, 1.0
    %v163 = vadd.f32 %v35, 1.0
    %v164 = vadd.f32 %v36, 1.0
    %v165 = vadd.f32 %v37, 1.0
    %v166 = vadd.f32 %v38, 1.0
    %v167 = vadd.f32 %v39, 1.0
    %v168 = vadd.f32 %v40, 1.0
    %v169 = vadd.f32 %v41, 1.0
    %v170 = vadd.f32 %v42, 1.0
    %v171 = vadd.f32 %v43, 1.0
    %v172 = vadd.f32 %v44, 1.0
    %v173 = vadd.f32 %v45, 1.0
    %v174 = vadd.f32 %v46, 1.0
    %v175 = vadd.f32 %v47, 1.0
    %v176 = vadd.f32 %v48, 1.0
    %v177 = vadd.f32 %v49, 1.0
    %v178 = vadd.f32 %v50, 1.0
    %v179 = vadd.f32 %v51, 1.0
    %v180 = vadd.f32 %v52, 1.0
    %v181 = vadd.f32 %v53, 1.0
    %v182 = vadd.f32 %v54, 1.0
    %v183 = vadd.f32 %v55, 1.0
    %v184 = vadd.f32 %v56, 1.0
    %v185 = vadd.f32 %v57, 1.0
    %v186 = vadd.f32 %v58, 1.0
    %v187 = vadd.f32 %v59, 1.0
    %v188 = vadd.f32 %v60, 1.0
    %v189 = vadd.f32 %v61, 1.0
    %v190 = vadd.f32 %v62, 1.0
    %v191 = vadd.f32 %v63, 1.0
    %v192 = vadd.f32 %v64, 1.0
    %v193 = vadd.f32 %v65, 1.0
    %v194 = vadd.f32 %v66, 1.0
    %v195 = vadd.f32 %v67, 1.0
    %v196 = vadd.f32 %v68, 1.0
    %v197 = vadd.f32 %v69, 1.0
    %v198 = vadd.f32 %v70, 1.0
    %v199 = vadd.f32 %v71, 1.0
    %v200 = vadd.f32 %v72, 1.0
    %v201 = vadd.f32 %v73, 1.0
    %v202 = vadd.f32 %v74, 1.0
    %v203 = vadd.f32 %v75, 1.0
    %v204 = vadd.f32 %v76, 1.0
    %v205 = vadd.f32 %v77, 1.0
    %v206 = vadd.f32 %v78, 1.0
    %v207 = vadd.f32 %v79, 1.0
    %v208 = vadd.f32 %v80, 1.0
    %v209 = vadd.f32 %v81, 1.0
    %v210 = vadd.f32 %v82, 1.0
    %v211 = vadd.f32 %v83, 1.0
    %v212 = vadd.f32 %v84, 1.0
    %v213 = vadd.f32 %v85, 1.0
    %v214 = vadd.f32 %v86, 1.0
    %v215 = vadd.f32 %v87, 1.0
    %v216 = vadd.f32 %v88, 1.0
    %v217 = vmul.f32 %v25, 1.442695
    %v218 = vpow.pop %v217
    %v219 = vmul.f32 %v26, 1.442695
    %v220 = vpow.pop %v219
    %v221 = vmul.f32 %v27, 1.442695
    %v222 = vpow.pop %v221
    %v223 = vmul.f32 %v28, 1.442695
    %v224 = vpow.pop %v223
    %v225 = vmul.f32 %v29, 1.442695
    %v226 = vpow.pop %v225
    %v227 = vmul.f32 %v30, 1.442695
    %v228 = vpow.pop %v227
    %v229 = vmul.f32 %v31, 1.442695
    %v230 = vpow.pop %v229
    %v231 = vmul.f32 %v32, 1.442695
    %v232 = vpow.pop %v231
    %v233 = vmul.f32 %v33, 1.442695
    %v234 = vpow.pop %v233
    %v235 = vmul.f32 %v34, 1.442695
    %v236 = vpow.pop %v235
    %v237 = vmul.f32 %v35, 1.442695
    %v238 = vpow.pop %v237
    %v239 = vmul.f32 %v36, 1.442695
    %v240 = vpow.pop %v239
    %v241 = vmul.f32 %v37, 1.442695
    %v242 = vpow.pop %v241
    %v243 = vmul.f32 %v38, 1.442695
    %v244 = vpow.pop %v243
    %v245 = vmul.f32 %v39, 1.442695
    %v246 = vpow.pop %v245
    %v247 = vmul.f32 %v40, 1.442695
    %v248 = vpow.pop %v247
    %v249 = vmul.f32 %v41, 1.442695
    %v250 = vpow.pop %v249
    %v251 = vmul.f32 %v42, 1.442695
    %v252 = vpow.pop %v251
    %v253 = vmul.f32 %v43, 1.442695
    %v254 = vpow.pop %v253
    %v255 = vmul.f32 %v44, 1.442695
    %v256 = vpow.pop %v255
    %v257 = vmul.f32 %v45, 1.442695
    %v258 = vpow.pop %v257
    %v259 = vmul.f32 %v46, 1.442695
    %v260 = vpow.pop %v259
    %v261 = vmul.f32 %v47, 1.442695
    %v262 = vpow.pop %v261
    %v263 = vmul.f32 %v48, 1.442695
    %v264 = vpow.pop %v263
    %v265 = vmul.f32 %v49, 1.442695
    %v266 = vpow.pop %v265
    %v267 = vmul.f32 %v50, 1.442695
    %v268 = vpow.pop %v267
    %v269 = vmul.f32 %v51, 1.442695
    %v270 = vpow.pop %v269
    %v271 = vmul.f32 %v52, 1.442695
    %v272 = vpow.pop %v271
    %v273 = vmul.f32 %v53, 1.442695
    %v274 = vpow.pop %v273
    %v275 = vmul.f32 %v54, 1.442695
    %v276 = vpow.pop %v275
    %v277 = vmul.f32 %v55, 1.442695
    %v278 = vpow.pop %v277
    %v279 = vmul.f32 %v56, 1.442695
    %v280 = vpow.pop %v279
    %v281 = vmul.f32 %v57, 1.442695
    %v282 = vpow.pop %v281
    %v283 = vmul.f32 %v58, 1.442695
    %v284 = vpow.pop %v283
    %v285 = vmul.f32 %v59, 1.442695
    %v286 = vpow.pop %v285
    %v287 = vmul.f32 %v60, 1.442695
    %v288 = vpow.pop %v287
    %v289 = vmul.f32 %v61, 1.442695
    %v290 = vpow.pop %v289
    %v291 = vmul.f32 %v62, 1.442695
    %v292 = vpow.pop %v291
    %v293 = vmul.f32 %v63, 1.442695
    %v294 = vpow.pop %v293
    %v295 = vmul.f32 %v64, 1.442695
    %v296 = vpow.pop %v295
    %v297 = vmul.f32 %v65, 1.442695
    %v298 = vpow.pop %v297
    %v299 = vmul.f32 %v66, 1.442695
    %v300 = vpow.pop %v299
    %v301 = vmul.f32 %v67, 1.442695
    %v302 = vpow.pop %v301
    %v303 = vmul.f32 %v68, 1.442695
    %v304 = vpow.pop %v303
    %v305 = vmul.f32 %v69, 1.442695
    %v306 = vpow.pop %v305
    %v307 = vmul.f32 %v70, 1.442695
    %v308 = vpow.pop %v307
    %v309 = vmul.f32 %v71, 1.442695
    %v310 = vpow.pop %v309
    %v311 = vmul.f32 %v72, 1.442695
    %v312 = vpow.pop %v311
    %v313 = vmul.f32 %v73, 1.442695
    %v314 = vpow.pop %v313
    %v315 = vmul.f32 %v74, 1.442695
    %v316 = vpow.pop %v315
    %v317 = vmul.f32 %v75, 1.442695
    %v318 = vpow.pop %v317
    %v319 = vmul.f32 %v76, 1.442695
    %v320 = vpow.pop %v319
    %v321 = vmul.f32 %v77, 1.442695
    %v322 = vpow.pop %v321
    %v323 = vmul.f32 %v78, 1.442695
    %v324 = vpow.pop %v323
    %v325 = vmul.f32 %v79, 1.442695
    %v326 = vpow.pop %v325
    %v327 = vmul.f32 %v80, 1.442695
    %v328 = vpow.pop %v327
    %v329 = vmul.f32 %v81, 1.442695
    %v330 = vpow.pop %v329
    %v331 = vmul.f32 %v82, 1.442695
    %v332 = vpow.pop %v331
    %v333 = vmul.f32 %v83, 1.442695
    %v334 = vpow.pop %v333
    %v335 = vmul.f32 %v84, 1.442695
    %v336 = vpow.pop %v335
    %v337 = vmul.f32 %v85, 1.442695
    %v338 = vpow.pop %v337
    %v339 = vmul.f32 %v86, 1.442695
    %v340 = vpow.pop %v339
    %v341 = vmul.f32 %v87, 1.442695
    %v342 = vpow.pop %v341
    %v343 = vmul.f32 %v88, 1.442695
    %v344 = vpow.pop %v343
    %v345 = vsel %vm89, %v153, %v218
    %v346 = vsel %vm90, %v154, %v220
    %v347 = vsel %vm91, %v155, %v222
    %v348 = vsel %vm92, %v156, %v224
    %v349 = vsel %vm93, %v157, %v226
    %v350 = vsel %vm94, %v158, %v228
    %v351 = vsel %vm95, %v159, %v230
    %v352 = vsel %vm96, %v160, %v232
    %v353 = vsel %vm97, %v161, %v234
    %v354 = vsel %vm98, %v162, %v236
    %v355 = vsel %vm99, %v163, %v238
    %v356 = vsel %vm100, %v164, %v240
    %v357 = vsel %vm101, %v165, %v242
    %v358 = vsel %vm102, %v166, %v244
    %v359 = vsel %vm103, %v167, %v246
    %v360 = vsel %vm104, %v168, %v248
    %v361 = vsel %vm105, %v169, %v250
    %v362 = vsel %vm106, %v170, %v252
    %v363 = vsel %vm107, %v171, %v254
    %v364 = vsel %vm108, %v172, %v256
    %v365 = vsel %vm109, %v173, %v258
    %v366 = vsel %vm110, %v174, %v260
    %v367 = vsel %vm111, %v175, %v262
    %v368 = vsel %vm112, %v176, %v264
    %v369 = vsel %vm113, %v177, %v266
    %v370 = vsel %vm114, %v178, %v268
    %v371 = vsel %vm115, %v179, %v270
    %v372 = vsel %vm116, %v180, %v272
    %v373 = vsel %vm117, %v181, %v274
    %v374 = vsel %vm118, %v182, %v276
    %v375 = vsel %vm119, %v183, %v278
    %v376 = vsel %vm120, %v184, %v280
    %v377 = vsel %vm121, %v185, %v282
    %v378 = vsel %vm122, %v186, %v284
    %v379 = vsel %vm123, %v187, %v286
    %v380 = vsel %vm124, %v188, %v288
    %v381 = vsel %vm125, %v189, %v290
    %v382 = vsel %vm126, %v190, %v292
    %v383 = vsel %vm127, %v191, %v294
    %v384 = vsel %vm128, %v192, %v296
    %v385 = vsel %vm129, %v193, %v298
    %v386 = vsel %vm130, %v194, %v300
    %v387 = vsel %vm131, %v195, %v302
    %v388 = vsel %vm132, %v196, %v304
    %v389 = vsel %vm133, %v197, %v306
    %v390 = vsel %vm134, %v198, %v308
    %v391 = vsel %vm135, %v199, %v310
    %v392 = vsel %vm136, %v200, %v312
    %v393 = vsel %vm137, %v201, %v314
    %v394 = vsel %vm138, %v202, %v316
    %v395 = vsel %vm139, %v203, %v318
    %v396 = vsel %vm140, %v204, %v320
    %v397 = vsel %vm141, %v205, %v322
    %v398 = vsel %vm142, %v206, %v324
    %v399 = vsel %vm143, %v207, %v326
    %v400 = vsel %vm144, %v208, %v328
    %v401 = vsel %vm145, %v209, %v330
    %v402 = vsel %vm146, %v210, %v332
    %v403 = vsel %vm147, %v211, %v334
    %v404 = vsel %vm148, %v212, %v336
    %v405 = vsel %vm149, %v213, %v338
    %v406 = vsel %vm150, %v214, %v340
    %v407 = vsel %vm151, %v215, %v342
    %v408 = vsel %vm152, %v216, %v344
    %409 = vst [vmem:[#allocation5] sm:$0xff] %v345
    %410 = vst [vmem:[#allocation5 + $0x8] sm:$0xff] %v346
    %411 = vst [vmem:[#allocation5 + $0x10] sm:$0xff] %v347
    %412 = vst [vmem:[#allocation5 + $0x18] sm:$0xff] %v348
    %413 = vst [vmem:[#allocation5 + $0x20] sm:$0xff] %v349
    %414 = vst [vmem:[#allocation5 + $0x28] sm:$0xff] %v350
    %415 = vst [vmem:[#allocation5 + $0x30] sm:$0xff] %v351
    %416 = vst [vmem:[#allocation5 + $0x38] sm:$0xff] %v352
    %417 = vst [vmem:[#allocation5 + $0x40] sm:$0xff] %v353
    %418 = vst [vmem:[#allocation5 + $0x48] sm:$0xff] %v354
    %419 = vst [vmem:[#allocation5 + $0x50] sm:$0xff] %v355
    %420 = vst [vmem:[#allocation5 + $0x58] sm:$0xff] %v356
    %421 = vst [vmem:[#allocation5 + $0x60] sm:$0xff] %v357
    %422 = vst [vmem:[#allocation5 + $0x68] sm:$0xff] %v358
    %423 = vst [vmem:[#allocation5 + $0x70] sm:$0xff] %v359
    %424 = vst [vmem:[#allocation5 + $0x78] sm:$0xff] %v360
    %425 = vst [vmem:[#allocation5 + $0x80] sm:$0xff] %v361
    %426 = vst [vmem:[#allocation5 + $0x88] sm:$0xff] %v362
    %427 = vst [vmem:[#allocation5 + $0x90] sm:$0xff] %v363
    %428 = vst [vmem:[#allocation5 + $0x98] sm:$0xff] %v364
    %429 = vst [vmem:[#allocation5 + $0xa0] sm:$0xff] %v365
    %430 = vst [vmem:[#allocation5 + $0xa8] sm:$0xff] %v366
    %431 = vst [vmem:[#allocation5 + $0xb0] sm:$0xff] %v367
    %432 = vst [vmem:[#allocation5 + $0xb8] sm:$0xff] %v368
    %433 = vst [vmem:[#allocation5 + $0xc0] sm:$0xff] %v369
    %434 = vst [vmem:[#allocation5 + $0xc8] sm:$0xff] %v370
    %435 = vst [vmem:[#allocation5 + $0xd0] sm:$0xff] %v371
    %436 = vst [vmem:[#allocation5 + $0xd8] sm:$0xff] %v372
    %437 = vst [vmem:[#allocation5 + $0xe0] sm:$0xff] %v373
    %438 = vst [vmem:[#allocation5 + $0xe8] sm:$0xff] %v374
    %439 = vst [vmem:[#allocation5 + $0xf0] sm:$0xff] %v375
    %440 = vst [vmem:[#allocation5 + $0xf8] sm:$0xff] %v376
    %441 = vst [vmem:[#allocation5 + $0x100] sm:$0xff] %v377
    %442 = vst [vmem:[#allocation5 + $0x108] sm:$0xff] %v378
    %443 = vst [vmem:[#allocation5 + $0x110] sm:$0xff] %v379
    %444 = vst [vmem:[#allocation5 + $0x118] sm:$0xff] %v380
    %445 = vst [vmem:[#allocation5 + $0x120] sm:$0xff] %v381
    %446 = vst [vmem:[#allocation5 + $0x128] sm:$0xff] %v382
    %447 = vst [vmem:[#allocation5 + $0x130] sm:$0xff] %v383
    %448 = vst [vmem:[#allocation5 + $0x138] sm:$0xff] %v384
    %449 = vst [vmem:[#allocation5 + $0x140] sm:$0xff] %v385
    %450 = vst [vmem:[#allocation5 + $0x148] sm:$0xff] %v386
    %451 = vst [vmem:[#allocation5 + $0x150] sm:$0xff] %v387
    %452 = vst [vmem:[#allocation5 + $0x158] sm:$0xff] %v388
    %453 = vst [vmem:[#allocation5 + $0x160] sm:$0xff] %v389
    %454 = vst [vmem:[#allocation5 + $0x168] sm:$0xff] %v390
    %455 = vst [vmem:[#allocation5 + $0x170] sm:$0xff] %v391
    %456 = vst [vmem:[#allocation5 + $0x178] sm:$0xff] %v392
    %457 = vst [vmem:[#allocation5 + $0x180] sm:$0xff] %v393
    %458 = vst [vmem:[#allocation5 + $0x188] sm:$0xff] %v394
    %459 = vst [vmem:[#allocation5 + $0x190] sm:$0xff] %v395
    %460 = vst [vmem:[#allocation5 + $0x198] sm:$0xff] %v396
    %461 = vst [vmem:[#allocation5 + $0x1a0] sm:$0xff] %v397
    %462 = vst [vmem:[#allocation5 + $0x1a8] sm:$0xff] %v398
    %463 = vst [vmem:[#allocation5 + $0x1b0] sm:$0xff] %v399
    %464 = vst [vmem:[#allocation5 + $0x1b8] sm:$0xff] %v400
    %465 = vst [vmem:[#allocation5 + $0x1c0] sm:$0xff] %v401
    %466 = vst [vmem:[#allocation5 + $0x1c8] sm:$0xff] %v402
    %467 = vst [vmem:[#allocation5 + $0x1d0] sm:$0xff] %v403
    %468 = vst [vmem:[#allocation5 + $0x1d8] sm:$0xff] %v404
    %469 = vst [vmem:[#allocation5 + $0x1e0] sm:$0xff] %v405
    %470 = vst [vmem:[#allocation5 + $0x1e8] sm:$0xff] %v406
    %471 = vst [vmem:[#allocation5 + $0x1f0] sm:$0xff] %v407
    %472 = vst [vmem:[#allocation5 + $0x1f8] sm:$0xff] %v408
    // Predicated region
    $region10: #{tpu_custom_call.1} parent=1 // pred_check
      _
    $region11: #{tpu_custom_call.1} parent=1 // pred_check_branch
      %474 = sbr.rel (0) target = $region13
    $region12: #{tpu_custom_call.1} parent=1 // pred_region
      %476 = vsyncadd [#allocation4], 0
      %s477 = sshll.u32 [#allocation5], 4
      %s478 = int_to_ptr.vmem [resolvable:$true] %s477
      %s479 = sshll.u32 %s1, 4
      %s480 = int_to_ptr.hbm [resolvable:$true] %s479
      %485 = dma.vmem_to_hbm [thread:$0]  %s478, 8192, %s480, [#allocation4], 256, 256, 16
    $region13: #{tpu_custom_call.1} parent=1 // pred_fallthru
      _
    // Predicated region
    $region14: #{tpu_custom_call.1} parent=1 // pred_check
      _
    $region15: #{tpu_custom_call.1} parent=1 // pred_check_branch
      %487 = sbr.rel (0) target = $region17
    $region16: #{tpu_custom_call.1} parent=1 // pred_region
      %489 = dma.done [#allocation4], 8192
    $region17: #{tpu_custom_call.1} parent=1 // pred_fallthru
      _
    %490 = vsyncpa [#allocation3], 1
    %491 = vsyncpa [#allocation4], 1

</llo_original>
